<compile_context>
chip_gen: v5e
topology: v5e:2x2
jax: 0.10.0
libtpu: 0.0.40
codegen_flags: <defaults>
</compile_context>

<pallas_src>
import math

import jax
import jax.numpy as jnp
from jax import lax
from jax.experimental import pallas as pl
from jax.experimental.pallas import tpu as pltpu


def _round_up(a: int, b: int) -> int:
    return (a + b - 1) // b * b


# Contract last dim of x (tm, tk) with last dim of weight (tn, tk) -> (tm, tn).
_DOT_DIMS = (((1,), (1,)), ((), ()))

# Safe on every generation: v5e/v6e physical VMEM = 128 MiB, v7x = 64 MiB/TC.
_VMEM_LIMIT_BYTES = 48 * 1024 * 1024


def _pad2d(a, rows, cols):
    """Zero-pad a 2-D array up to (rows, cols); no-op (no copy) if already there."""
    r, c = a.shape
    if r == rows and c == cols:
        return a
    return jnp.pad(a, ((0, rows - r), (0, cols - c)))


def _single_k_kernel(x_ref, w_ref, o_ref):
    """One output tile, full reduction in a single MXU pass (no accumulator)."""
    o_ref[...] = lax.dot_general(
        x_ref[...],
        w_ref[...],
        dimension_numbers=_DOT_DIMS,
        preferred_element_type=jnp.float32,
    ).astype(o_ref.dtype)


def _acc_kernel(x_ref, w_ref, o_ref, acc_ref):
    """One (tm, tn) output tile, reducing over the K (hidden) grid axis."""

    @pl.when(pl.program_id(2) == 0)
    def _():
        acc_ref[...] = jnp.zeros_like(acc_ref)

    acc_ref[...] += lax.dot_general(
        x_ref[...],
        w_ref[...],
        dimension_numbers=_DOT_DIMS,
        preferred_element_type=jnp.float32,
    )

    @pl.when(pl.program_id(2) == pl.num_programs(2) - 1)
    def _():
        o_ref[...] = acc_ref[...].astype(o_ref.dtype)


@jax.jit
def embedding_sim(x, weight):
    """y = x @ weight.T  with x: (..., D), weight: (V, D) -> y: (..., V)."""
    *lead, D = x.shape
    V, Dw = weight.shape
    assert D == Dw, "hidden dim mismatch"

    out_dtype = jnp.result_type(x.dtype, weight.dtype)
    x = x.astype(out_dtype)
    weight = weight.astype(out_dtype)
    itemsize = jnp.dtype(out_dtype).itemsize

    M = math.prod(lead) if lead else 1
    x2d = x.reshape(M, D)

    D_pad0 = _round_up(D, 128)
    V_pad0 = _round_up(V, 128)

    # Schedule selection: if the padded activations comfortably fit in VMEM,
    # keep x fully resident and stream the (V, D) weight exactly once.
    M_pad_res = _round_up(M, 8)
    x_resident = (M_pad_res * D_pad0 * itemsize <= 4 * 1024 * 1024) and (
        M_pad_res <= 1024
    )

    def cparams(semantics):
        return pltpu.CompilerParams(
            dimension_semantics=semantics,
            vmem_limit_bytes=_VMEM_LIMIT_BYTES,
        )

    if x_resident:
        M_pad, D_pad = M_pad_res, D_pad0
        # Largest lane-dense vocab tile such that the double-buffered weight
        # block (<=12 MiB) and the double-buffered output block (<=16 MiB)
        # stay well inside scoped VMEM alongside the resident x block.
        tn_w = (12 * 1024 * 1024) // (2 * D_pad * itemsize)
        tn_o = (16 * 1024 * 1024) // (2 * M_pad * itemsize)
        tn = max(128, (min(tn_w, tn_o) // 128) * 128)
        tn = min(2048, V_pad0, tn)
        V_pad = _round_up(V, tn)

        xp = _pad2d(x2d, M_pad, D_pad)
        wp = _pad2d(weight, V_pad, D_pad)

        out_padded = pl.pallas_call(
            _single_k_kernel,
            out_shape=jax.ShapeDtypeStruct((M_pad, V_pad), out_dtype),
            grid_spec=pltpu.PrefetchScalarGridSpec(
                num_scalar_prefetch=0,
                grid=(V_pad // tn,),
                in_specs=[
                    # x: resident across the whole vocab sweep.
                    pl.BlockSpec((M_pad, D_pad), lambda j: (0, 0)),
                    # weight: streamed from HBM exactly once.
                    pl.BlockSpec((tn, D_pad), lambda j: (j, 0)),
                ],
                out_specs=pl.BlockSpec((M_pad, tn), lambda j: (0, j)),
            ),
            compiler_params=cparams(("parallel",)),
        )(xp, wp)
    else:
        # Large-M path: MXU-filling tiles.
        tm = 256 if M >= 256 else _round_up(M, 8)
        tn = 512 if V_pad0 >= 512 else V_pad0

        # K-tile budget: double-buffered x + weight K-slabs <= 24 MiB.
        tk_cap = (24 * 1024 * 1024) // (2 * (tm + tn) * itemsize)
        tk_cap = max(512, (tk_cap // 128) * 128)
        # Split K into the fewest tiles that respect the cap, with minimal padding.
        nk = max(1, -(-D_pad0 // tk_cap))
        tk = _round_up(-(-D_pad0 // nk), 128)

        D_pad = nk * tk
        V_pad = _round_up(V, tn)
        M_pad = _round_up(M, tm)

        xp = _pad2d(x2d, M_pad, D_pad)
        wp = _pad2d(weight, V_pad, D_pad)

        nm, nv = M_pad // tm, V_pad // tn

        if nk == 1:
            # Single K tile covers the whole hidden dim: no accumulator needed.
            # Choose grid order to minimize re-streamed HBM traffic: the matrix
            # whose block index depends only on the OUTER axis stays resident
            # across the inner sweep; the other one is fully re-streamed once
            # per outer step.
            traffic_m_outer = (M_pad + nm * V_pad) * D_pad   # x resident per i
            traffic_v_outer = (V_pad + nv * M_pad) * D_pad   # w resident per j

            if traffic_m_outer <= traffic_v_outer:
                grid = (nm, nv)
                x_spec = pl.BlockSpec((tm, tk), lambda i, j: (i, 0))
                w_spec = pl.BlockSpec((tn, tk), lambda i, j: (j, 0))
                o_spec = pl.BlockSpec((tm, tn), lambda i, j: (i, j))
            else:
                grid = (nv, nm)
                x_spec = pl.BlockSpec((tm, tk), lambda j, i: (i, 0))
                w_spec = pl.BlockSpec((tn, tk), lambda j, i: (j, 0))
                o_spec = pl.BlockSpec((tm, tn), lambda j, i: (i, j))

            out_padded = pl.pallas_call(
                _single_k_kernel,
                out_shape=jax.ShapeDtypeStruct((M_pad, V_pad), out_dtype),
                grid_spec=pltpu.PrefetchScalarGridSpec(
                    num_scalar_prefetch=0,
                    grid=grid,
                    in_specs=[x_spec, w_spec],
                    out_specs=o_spec,
                ),
                compiler_params=cparams(("parallel", "parallel")),
            )(xp, wp)
        else:
            out_padded = pl.pallas_call(
                _acc_kernel,
                out_shape=jax.ShapeDtypeStruct((M_pad, V_pad), out_dtype),
                grid_spec=pltpu.PrefetchScalarGridSpec(
                    num_scalar_prefetch=0,
                    grid=(nm, nv, nk),
                    in_specs=[
                        pl.BlockSpec((tm, tk), lambda i, j, k: (i, k)),
                        pl.BlockSpec((tn, tk), lambda i, j, k: (j, k)),
                    ],
                    out_specs=pl.BlockSpec((tm, tn), lambda i, j, k: (i, j)),
                    scratch_shapes=[pltpu.VMEM((tm, tn), jnp.float32)],
                ),
                compiler_params=cparams(("parallel", "parallel", "arbitrary")),
            )(xp, wp)

    out2d = out_padded if (out_padded.shape == (M, V)) else out_padded[:M, :V]
    return out2d.reshape(*lead, V)


if __name__ == "__main__":
    # Small shapes consistent with the module: x (batch, seq, hidden), weight (vocab, hidden).
    batch, seq, hidden, vocab = 2, 8, 128, 256

    key = jax.random.PRNGKey(0)
    kx, kw = jax.random.split(key)
    x = jax.random.normal(kx, (batch, seq, hidden), dtype=jnp.float32)
    # Deterministic synthetic "embedding" weight (the buffer in the PyTorch module).
    weight = jax.random.normal(kw, (vocab, hidden), dtype=jnp.float32) * 0.02

    # Path 1: small batch*seq -> x-resident schedule (weight streamed once).
    y = embedding_sim(x, weight)
    jax.block_until_ready(y)
    y_ref = jnp.matmul(x, weight.T)
    assert y.shape == (batch, seq, vocab)
    assert jnp.allclose(y, y_ref, atol=1e-4, rtol=1e-4), "mismatch vs reference (resident path)"

    # Path 2: larger batch*seq (non-tile-multiple) -> padded tiled schedule.
    x_big = jax.random.normal(kx, (2, 520, hidden), dtype=jnp.float32)
    y_big = embedding_sim(x_big, weight)
    jax.block_until_ready(y_big)
    y_big_ref = jnp.matmul(x_big, weight.T)
    assert y_big.shape == (2, 520, vocab)
    assert jnp.allclose(y_big, y_big_ref, atol=1e-4, rtol=1e-4), "mismatch vs reference (tiled path)"

    print("KERNEL_OK")
</pallas_src>

<mosaic_0001>
module attributes {stable_mosaic.version = 11 : i64} {
  func.func @_single_k_kernel(%arg0: i32, %arg1: memref<16x128xf32, #tpu.memory_space<vmem>>, %arg2: memref<256x128xf32, #tpu.memory_space<vmem>>, %arg3: memref<16x256xf32, #tpu.memory_space<vmem>>) attributes {dimension_semantics = [#tpu.dimension_semantics<parallel>], iteration_bounds = array<i64: 1>, scalar_prefetch = 0 : i64, scratch_operands = 0 : i64, tpu.core_type = #tpu.core_type<tc>, window_params = [{pipeline_mode = #tpu.pipeline_mode<synchronous>, transform_indices = @transform_0, window_bounds = array<i64: 16, 128>}, {transform_indices = @transform_1, window_bounds = array<i64: 256, 128>}, {transform_indices = @transform_2, window_bounds = array<i64: 16, 256>}]} {
    %c0 = arith.constant 0 : index
    %c0_0 = arith.constant 0 : index
    %0 = vector.load %arg1[%c0, %c0_0] : memref<16x128xf32, #tpu.memory_space<vmem>>, vector<16x128xf32>
    %c0_1 = arith.constant 0 : index
    %c0_2 = arith.constant 0 : index
    %1 = vector.load %arg2[%c0_1, %c0_2] : memref<256x128xf32, #tpu.memory_space<vmem>>, vector<256x128xf32>
    %cst = arith.constant dense<0.000000e+00> : vector<16x256xf32>
    %2 = tpu.matmul %0, %1, %cst {dimension_numbers = #tpu.dot_dimension_numbers<[1], [1], [0], [0], [0, 0, 1, 0], [], []>} : vector<16x128xf32>, vector<256x128xf32>, vector<16x256xf32> -> vector<16x256xf32>
    %c0_3 = arith.constant 0 : index
    %c0_4 = arith.constant 0 : index
    %3 = vector.load %arg3[%c0_3, %c0_4] : memref<16x256xf32, #tpu.memory_space<vmem>>, vector<16x256xf32>
    tpu.vector_store %arg3[%c0_3, %c0_4], %2 {strides = array<i32>} : memref<16x256xf32, #tpu.memory_space<vmem>>, vector<16x256xf32>,
    return
  }
  func.func @transform_0(%arg0: i32) -> (i32, i32) {
    %c0_i32 = arith.constant 0 : i32
    %c0_i32_0 = arith.constant 0 : i32
    %c0_i32_1 = arith.constant 0 : i32
    return %c0_i32, %c0_i32_0 : i32, i32
  }
  func.func @transform_1(%arg0: i32) -> (i32, i32) {
    %c0_i32 = arith.constant 0 : i32
    %c0_i32_0 = arith.constant 0 : i32
    return %arg0, %c0_i32 : i32, i32
  }
  func.func @transform_2(%arg0: i32) -> (i32, i32) {
    %c0_i32 = arith.constant 0 : i32
    %c0_i32_0 = arith.constant 0 : i32
    return %c0_i32, %arg0 : i32, i32
  }
}

</mosaic_0001>

<llo_original>
// kernel: embedding_sim.1
$region0: #{embedding_sim.1}
  #allocation0 [shape = 'u32[]', space=smem, size = 0x4, offset = 0x4, fixed_abs, tag = 'smem constant byte address 0x4 - core index']
  #allocation1 [shape = 'u32[72,128]{1,0:T(1,128)}', space=vmem, size = 0x9000, scoped, tag = 'internal scratch']
  %s0 = inlined_call_operand.hbm [shape: f32[16,128], index: 0, kind: input, shape index: {}]
  %s1 = inlined_call_operand.hbm [shape: f32[256,128], index: 1, kind: input, shape index: {}]
  %s2 = inlined_call_operand.hbm [shape: f32[16,256], index: 2, kind: output, shape index: {}]
  %s3 = sld [smem:[#allocation0]]
  $region26: #{embedding_sim.1} parent=0
    _
  %s5 = ssub.s32 1, %s3
  %s6 = scalar_select 0, %s5, %s3
  $region1: #{embedding_sim.1} parent=0
    #allocation2 [shape = 'u8[8192]{0}', space=vmem, size = 0x2000, scoped, tag = 'input window, operand 0, single buffered']
    #allocation3 [shape = 's32[1]{0}', space=sflag, size = 0x4, scoped, tag = 'scoped memory for embedding_sim.1']
    #allocation4 [shape = 's32[1]{0}', space=sflag, size = 0x4, scoped, tag = 'scoped memory for embedding_sim.1']
    #allocation5 [shape = 'u8[131072]{0}', space=vmem, size = 0x20000, scoped, tag = 'input window, operand 1, single buffered']
    #allocation6 [shape = 's32[1]{0}', space=sflag, size = 0x4, scoped, tag = 'scoped memory for embedding_sim.1']
    #allocation7 [shape = 'u8[16384]{0}', space=vmem, size = 0x4000, scoped, tag = 'output window, operand 0, single buffered']
    %7 = vsyncpa [#allocation3], 0
    %8 = vsyncpa [#allocation6], 0
    %9 = vsyncpa [#allocation4], 0
    // Predicated region
    $region2: #{embedding_sim.1} parent=1 // pred_check
      _
    $region3: #{embedding_sim.1} parent=1 // pred_check_branch
      %11 = sbr.rel (0) target = $region5
    $region4: #{embedding_sim.1} parent=1 // pred_region
      %13 = vsyncadd [#allocation3], 0
      %s14 = sshll.u32 %s0, 4
      %s15 = int_to_ptr.hbm [resolvable:$true] %s14
      %s16 = sshll.u32 [#allocation2], 4
      %s17 = int_to_ptr.vmem [resolvable:$true] %s16
      %22 = dma.hbm_to_vmem [thread:$0]  %s15, 256, %s17, [#allocation3], 128, 128, 8
    $region5: #{embedding_sim.1} parent=1 // pred_fallthru
      _
    // Predicated region
    $region6: #{embedding_sim.1} parent=1 // pred_check
      _
    $region7: #{embedding_sim.1} parent=1 // pred_check_branch
      %24 = sbr.rel (0) target = $region9
    $region8: #{embedding_sim.1} parent=1 // pred_region
      %26 = vsyncadd [#allocation6], 0
      %s27 = sshll.u32 %s1, 4
      %s28 = int_to_ptr.hbm [resolvable:$true] %s27
      %s29 = sshll.u32 [#allocation5], 4
      %s30 = int_to_ptr.vmem [resolvable:$true] %s29
      %35 = dma.hbm_to_vmem [thread:$0]  %s28, 4096, %s30, [#allocation6], 128, 128, 8
    $region9: #{embedding_sim.1} parent=1 // pred_fallthru
      _
    // Predicated region
    $region10: #{embedding_sim.1} parent=1 // pred_check
      _
    $region11: #{embedding_sim.1} parent=1 // pred_check_branch
      %37 = sbr.rel (0) target = $region13
    $region12: #{embedding_sim.1} parent=1 // pred_region
      %39 = dma.done [#allocation3], 256
    $region13: #{embedding_sim.1} parent=1 // pred_fallthru
      _
    // Predicated region
    $region14: #{embedding_sim.1} parent=1 // pred_check
      _
    $region15: #{embedding_sim.1} parent=1 // pred_check_branch
      %41 = sbr.rel (0) target = $region17
    $region16: #{embedding_sim.1} parent=1 // pred_region
      %43 = dma.done [#allocation6], 4096
    $region17: #{embedding_sim.1} parent=1 // pred_fallthru
      _
    %v44 = vld [vmem:[#allocation2] sm:$0xff]
    %v45 = vld [vmem:[#allocation2 + $0x8] sm:$0xff]
    %v46 = vld [vmem:[#allocation5] sm:$0xff]
    %v47 = vld [vmem:[#allocation5 + $0x8] sm:$0xff]
    %v48 = vld [vmem:[#allocation5 + $0x10] sm:$0xff]
    %v49 = vld [vmem:[#allocation5 + $0x18] sm:$0xff]
    %v50 = vld [vmem:[#allocation5 + $0x20] sm:$0xff]
    %v51 = vld [vmem:[#allocation5 + $0x28] sm:$0xff]
    %v52 = vld [vmem:[#allocation5 + $0x30] sm:$0xff]
    %v53 = vld [vmem:[#allocation5 + $0x38] sm:$0xff]
    %v54 = vld [vmem:[#allocation5 + $0x40] sm:$0xff]
    %v55 = vld [vmem:[#allocation5 + $0x48] sm:$0xff]
    %v56 = vld [vmem:[#allocation5 + $0x50] sm:$0xff]
    %v57 = vld [vmem:[#allocation5 + $0x58] sm:$0xff]
    %v58 = vld [vmem:[#allocation5 + $0x60] sm:$0xff]
    %v59 = vld [vmem:[#allocation5 + $0x68] sm:$0xff]
    %v60 = vld [vmem:[#allocation5 + $0x70] sm:$0xff]
    %v61 = vld [vmem:[#allocation5 + $0x78] sm:$0xff]
    %v62 = vld [vmem:[#allocation5 + $0x80] sm:$0xff]
    %v63 = vld [vmem:[#allocation5 + $0x88] sm:$0xff]
    %v64 = vld [vmem:[#allocation5 + $0x90] sm:$0xff]
    %v65 = vld [vmem:[#allocation5 + $0x98] sm:$0xff]
    %v66 = vld [vmem:[#allocation5 + $0xa0] sm:$0xff]
    %v67 = vld [vmem:[#allocation5 + $0xa8] sm:$0xff]
    %v68 = vld [vmem:[#allocation5 + $0xb0] sm:$0xff]
    %v69 = vld [vmem:[#allocation5 + $0xb8] sm:$0xff]
    %v70 = vld [vmem:[#allocation5 + $0xc0] sm:$0xff]
    %v71 = vld [vmem:[#allocation5 + $0xc8] sm:$0xff]
    %v72 = vld [vmem:[#allocation5 + $0xd0] sm:$0xff]
    %v73 = vld [vmem:[#allocation5 + $0xd8] sm:$0xff]
    %v74 = vld [vmem:[#allocation5 + $0xe0] sm:$0xff]
    %v75 = vld [vmem:[#allocation5 + $0xe8] sm:$0xff]
    %v76 = vld [vmem:[#allocation5 + $0xf0] sm:$0xff]
    %v77 = vld [vmem:[#allocation5 + $0xf8] sm:$0xff]
    %78 = vmatpush.xpose.msra.mxu0 %v61
    %79 = vmatpush.xpose.msra.mxu0 %v60
    %80 = vmatpush.xpose.msra.mxu0 %v59
    %81 = vmatpush.xpose.msra.mxu0 %v58
    %82 = vmatpush.xpose.msra.mxu0 %v57
    %83 = vmatpush.xpose.msra.mxu0 %v56
    %84 = vmatpush.xpose.msra.mxu0 %v55
    %85 = vmatpush.xpose.msra.mxu0 %v54
    %86 = vmatpush.xpose.msra.mxu0 %v53
    %87 = vmatpush.xpose.msra.mxu0 %v52
    %88 = vmatpush.xpose.msra.mxu0 %v51
    %89 = vmatpush.xpose.msra.mxu0 %v50
    %90 = vmatpush.xpose.msra.mxu0 %v49
    %91 = vmatpush.xpose.msra.mxu0 %v48
    %92 = vmatpush.xpose.msra.mxu0 %v47
    %93 = vmatpush.xpose.msra.mxu0 %v46
    %94 = vmatmul.f32.gmra.mxu0 %v44
    %v95 = vpop.f32.mrf.mxu0
    %v96 = vadd.f32 0.0, %v95
    %97 = vmatmul.f32.gmra.mxu0 %v45
    %v98 = vpop.f32.mrf.mxu0
    %v99 = vadd.f32 0.0, %v98
    %100 = vdwg.mxu0
    %101 = vmatpush.xpose.msra.mxu0 %v77
    %102 = vmatpush.xpose.msra.mxu0 %v76
    %103 = vmatpush.xpose.msra.mxu0 %v75
    %104 = vmatpush.xpose.msra.mxu0 %v74
    %105 = vmatpush.xpose.msra.mxu0 %v73
    %106 = vmatpush.xpose.msra.mxu0 %v72
    %107 = vmatpush.xpose.msra.mxu0 %v71
    %108 = vmatpush.xpose.msra.mxu0 %v70
    %109 = vmatpush.xpose.msra.mxu0 %v69
    %110 = vmatpush.xpose.msra.mxu0 %v68
    %111 = vmatpush.xpose.msra.mxu0 %v67
    %112 = vmatpush.xpose.msra.mxu0 %v66
    %113 = vmatpush.xpose.msra.mxu0 %v65
    %114 = vmatpush.xpose.msra.mxu0 %v64
    %115 = vmatpush.xpose.msra.mxu0 %v63
    %116 = vmatpush.xpose.msra.mxu0 %v62
    %117 = vmatmul.f32.gmra.mxu0 %v44
    %v118 = vpop.f32.mrf.mxu0
    %v119 = vadd.f32 0.0, %v118
    %120 = vmatmul.f32.gmra.mxu0 %v45
    %v121 = vpop.f32.mrf.mxu0
    %v122 = vadd.f32 0.0, %v121
    %123 = vdwg.mxu0
    %124 = vst [vmem:[#allocation7] sm:$0xff] %v96
    %125 = vst [vmem:[#allocation7 + $0x8] sm:$0xff] %v119
    %126 = vst [vmem:[#allocation7 + $0x10] sm:$0xff] %v99
    %127 = vst [vmem:[#allocation7 + $0x18] sm:$0xff] %v122
    // Predicated region
    $region18: #{embedding_sim.1} parent=1 // pred_check
      _
    $region19: #{embedding_sim.1} parent=1 // pred_check_branch
      %129 = sbr.rel (0) target = $region21
    $region20: #{embedding_sim.1} parent=1 // pred_region
      %131 = vsyncadd [#allocation4], 0
      %s132 = sshll.u32 [#allocation7], 4
      %s133 = int_to_ptr.vmem [resolvable:$true] %s132
      %s134 = sshll.u32 %s2, 4
      %s135 = int_to_ptr.hbm [resolvable:$true] %s134
      %140 = dma.vmem_to_hbm [thread:$0]  %s133, 512, %s135, [#allocation4], 256, 256, 16
    $region21: #{embedding_sim.1} parent=1 // pred_fallthru
      _
    // Predicated region
    $region22: #{embedding_sim.1} parent=1 // pred_check
      _
    $region23: #{embedding_sim.1} parent=1 // pred_check_branch
      %142 = sbr.rel (0) target = $region25
    $region24: #{embedding_sim.1} parent=1 // pred_region
      %144 = dma.done [#allocation4], 512
    $region25: #{embedding_sim.1} parent=1 // pred_fallthru
      _
    %145 = vsyncpa [#allocation3], 1
    %146 = vsyncpa [#allocation6], 1
    %147 = vsyncpa [#allocation4], 1

</llo_original>
